<compile_context>
chip_gen: v7x
topology: tpu7x:2x2x1
jax: 0.10.0
libtpu: 0.0.40
codegen_flags: <defaults>
</compile_context>

<pallas_src>
import math
import functools

import jax
import jax.numpy as jnp
from jax.experimental import pallas as pl
from jax.experimental.pallas import tpu as pltpu


def _round_up(x, m):
    return ((x + m - 1) // m) * m


def _pixelpred_kernel(*refs, nlayers):
    # refs = (x_ref, w0, b0, w1, b1, ..., w_{L-1}, b_{L-1}, o_ref)
    # x_ref:  [ci, bc]       pixels on the lane axis
    # w_k:    [out_k, in_k]  PyTorch nn.Linear layout
    # b_k:    [out_k, 1]
    # o_ref:  [co, bc]
    x_ref = refs[0]
    o_ref = refs[-1]
    param_refs = refs[1:-1]

    h = x_ref[...]  # f32 [ci, bc]

    # Hidden layers: Linear + LeakyReLU (negative_slope = 0.01, PyTorch default).
    for kl in range(nlayers - 1):
        w = param_refs[2 * kl][...]
        b = param_refs[2 * kl + 1][...]
        h = jnp.dot(w, h, preferred_element_type=jnp.float32) + b  # [out_k, bc]
        h = jnp.where(h > 0, h, 0.01 * h)

    # Final layer: Linear + clamp(-1, 1).
    w = param_refs[2 * (nlayers - 1)][...]
    b = param_refs[2 * (nlayers - 1) + 1][...]
    h = jnp.dot(w, h, preferred_element_type=jnp.float32) + b
    o_ref[...] = jnp.clip(h, -1.0, 1.0).astype(o_ref.dtype)


def pixelpred_forward(x, weights, biases, *, block_cols=4096):
    """Apply the PixelPred MLP to every pixel/sample.

    x:          [..., ci] float32 (any leading dims; flattened to N pixels)
    weights[k]: [out_k, in_k]  (PyTorch nn.Linear weight layout)
    biases[k]:  [out_k, 1]
    returns:    [..., co]
    """
    nlayers = len(weights)
    lead_shape = x.shape[:-1]
    ci = x.shape[-1]
    co = weights[-1].shape[0]
    N = int(math.prod(lead_shape)) if lead_shape else 1

    # Lane-dense presentation: pixels on the last (lane) axis.
    xt = x.reshape(N, ci).T  # [ci, N]

    # Block size: cap at block_cols, multiple of 128, and try to keep >= 2 grid
    # steps so v7x's two TensorCores both get work.
    block_cols = _round_up(max(int(block_cols), 128), 128)
    bc = min(block_cols, _round_up(max(pl.cdiv(N, 2), 128), 128))
    n_pad = _round_up(N, bc)
    if n_pad != N:
        xt = jnp.pad(xt, ((0, 0), (0, n_pad - N)))
    grid = (n_pad // bc,)

    # x / out tiled over the pixel (lane) axis; weights & biases are
    # grid-invariant full blocks (tiny, stay resident in VMEM).
    in_specs = [pl.BlockSpec((ci, bc), lambda i: (0, i))]
    params_flat = []
    for w, b in zip(weights, biases):
        in_specs.append(pl.BlockSpec(w.shape, lambda i: (0, 0)))
        in_specs.append(pl.BlockSpec(b.shape, lambda i: (0, 0)))
        params_flat.extend([w, b])

    out_spec = pl.BlockSpec((co, bc), lambda i: (0, i))

    flops = 2 * n_pad * sum(int(w.shape[0]) * int(w.shape[1]) for w in weights)
    param_bytes = sum(int(w.size) + int(b.size) for w, b in zip(weights, biases)) * 4
    bytes_accessed = n_pad * (ci + co) * 4 + param_bytes

    kernel = functools.partial(_pixelpred_kernel, nlayers=nlayers)

    out_t = pl.pallas_call(
        kernel,
        out_shape=jax.ShapeDtypeStruct((co, n_pad), x.dtype),
        grid=grid,
        in_specs=in_specs,
        out_specs=out_spec,
        compiler_params=pltpu.CompilerParams(
            dimension_semantics=("parallel",),
            vmem_limit_bytes=32 * 1024 * 1024,
        ),
        cost_estimate=pl.CostEstimate(
            flops=flops, transcendentals=0, bytes_accessed=bytes_accessed),
    )(xt, *params_flat)

    # Back to the module's [..., co] layout (cheap layout plumbing outside the
    # kernel; the heavy per-pixel work ran lane-dense).
    out = out_t[:, :N].T
    return out.reshape(lead_shape + (co,))


def init_pixelpred_params(key, nlayers, ci, nch, co):
    """Deterministic init mimicking nn.Linear default (uniform +/- 1/sqrt(fan_in)).

    Weights are stored PyTorch-style as [out_features, in_features];
    biases as [out_features, 1].
    """
    dims = []
    nin = ci
    for _ in range(nlayers - 1):
        dims.append((nin, nch))
        nin = nch
    dims.append((nch, co))

    weights, biases = [], []
    for (fan_in, fan_out) in dims:
        key, kw, kb = jax.random.split(key, 3)
        bound = 1.0 / math.sqrt(fan_in)
        weights.append(jax.random.uniform(
            kw, (fan_out, fan_in), jnp.float32, -bound, bound))
        biases.append(jax.random.uniform(
            kb, (fan_out, 1), jnp.float32, -bound, bound))
    return weights, biases


def pixelpred_reference(x, weights, biases):
    """Pure-JAX reference in the natural [..., ci] row layout."""
    h = x
    for w, b in zip(weights[:-1], biases[:-1]):
        h = h @ w.T + b[:, 0]
        h = jnp.where(h > 0, h, 0.01 * h)
    h = h @ weights[-1].T + biases[-1][:, 0]
    return jnp.clip(h, -1.0, 1.0)


if __name__ == "__main__":
    nlayers, ci, nch, co = 3, 8, 32, 4
    # batch=2, 16x16 pixels, ci=8 features per pixel -> N=512 samples
    x_shape = (2, 16, 16, ci)

    key = jax.random.PRNGKey(0)
    key, kx = jax.random.split(key)
    x = jax.random.normal(kx, x_shape, jnp.float32)

    weights, biases = init_pixelpred_params(key, nlayers, ci, nch, co)

    # jit so the wrapper-side transpose/pad and the final un-transpose fuse
    # into the same XLA program as the pallas_call.
    forward = jax.jit(pixelpred_forward)

    out = forward(x, weights, biases)
    out = jax.block_until_ready(out)

    ref = pixelpred_reference(x, weights, biases)
    assert out.shape == x_shape[:-1] + (co,)
    assert jnp.allclose(out, ref, atol=1e-4, rtol=1e-4), "mismatch vs reference"

    print("KERNEL_OK")
</pallas_src>

<mosaic_0001>
module attributes {stable_mosaic.version = 11 : i64} {
  func.func @_pixelpred_kernel(%arg0: i32, %arg1: memref<8x256xf32, #tpu.memory_space<vmem>>, %arg2: memref<32x8xf32, #tpu.memory_space<vmem>>, %arg3: memref<32x1xf32, #tpu.memory_space<vmem>>, %arg4: memref<32x32xf32, #tpu.memory_space<vmem>>, %arg5: memref<32x1xf32, #tpu.memory_space<vmem>>, %arg6: memref<4x32xf32, #tpu.memory_space<vmem>>, %arg7: memref<4x1xf32, #tpu.memory_space<vmem>>, %arg8: memref<4x256xf32, #tpu.memory_space<vmem>>) attributes {dimension_semantics = [#tpu.dimension_semantics<parallel>], iteration_bounds = array<i64: 2>, scalar_prefetch = 0 : i64, scratch_operands = 0 : i64, tpu.core_type = #tpu.core_type<tc>, window_params = [{transform_indices = @transform_0, window_bounds = array<i64: 8, 256>}, {pipeline_mode = #tpu.pipeline_mode<synchronous>, transform_indices = @transform_1, window_bounds = array<i64: 32, 8>}, {pipeline_mode = #tpu.pipeline_mode<synchronous>, transform_indices = @transform_2, window_bounds = array<i64: 32, 1>}, {pipeline_mode = #tpu.pipeline_mode<synchronous>, transform_indices = @transform_3, window_bounds = array<i64: 32, 32>}, {pipeline_mode = #tpu.pipeline_mode<synchronous>, transform_indices = @transform_4, window_bounds = array<i64: 32, 1>}, {pipeline_mode = #tpu.pipeline_mode<synchronous>, transform_indices = @transform_5, window_bounds = array<i64: 4, 32>}, {pipeline_mode = #tpu.pipeline_mode<synchronous>, transform_indices = @transform_6, window_bounds = array<i64: 4, 1>}, {transform_indices = @transform_7, window_bounds = array<i64: 4, 256>}]} {
    %c0 = arith.constant 0 : index
    %c0_0 = arith.constant 0 : index
    %0 = vector.load %arg1[%c0, %c0_0] : memref<8x256xf32, #tpu.memory_space<vmem>>, vector<8x256xf32>
    %c0_1 = arith.constant 0 : index
    %c0_2 = arith.constant 0 : index
    %1 = vector.load %arg2[%c0_1, %c0_2] : memref<32x8xf32, #tpu.memory_space<vmem>>, vector<32x8xf32>
    %c0_3 = arith.constant 0 : index
    %c0_4 = arith.constant 0 : index
    %2 = vector.load %arg3[%c0_3, %c0_4] : memref<32x1xf32, #tpu.memory_space<vmem>>, vector<32x1xf32>
    %cst = arith.constant dense<0.000000e+00> : vector<32x256xf32>
    %3 = tpu.matmul %1, %0, %cst {dimension_numbers = #tpu.dot_dimension_numbers<[1], [0], [0], [1], [0, 0, 1, 1], [], []>} : vector<32x8xf32>, vector<8x256xf32>, vector<32x256xf32> -> vector<32x256xf32>
    %4 = vector.broadcast %2 : vector<32x1xf32> to vector<32x256xf32>
    %5 = arith.addf %3, %4 : vector<32x256xf32>
    %cst_5 = arith.constant 0.000000e+00 : f32
    %6 = vector.broadcast %cst_5 : f32 to vector<32x256xf32>
    %7 = arith.cmpf ogt, %5, %6 : vector<32x256xf32>
    %cst_6 = arith.constant 0.00999999977 : f32
    %8 = vector.broadcast %cst_6 : f32 to vector<32x256xf32>
    %9 = arith.mulf %8, %5 : vector<32x256xf32>
    %10 = arith.select %7, %5, %9 : vector<32x256xi1>, vector<32x256xf32>
    %c0_7 = arith.constant 0 : index
    %c0_8 = arith.constant 0 : index
    %11 = vector.load %arg4[%c0_7, %c0_8] : memref<32x32xf32, #tpu.memory_space<vmem>>, vector<32x32xf32>
    %c0_9 = arith.constant 0 : index
    %c0_10 = arith.constant 0 : index
    %12 = vector.load %arg5[%c0_9, %c0_10] : memref<32x1xf32, #tpu.memory_space<vmem>>, vector<32x1xf32>
    %cst_11 = arith.constant dense<0.000000e+00> : vector<32x256xf32>
    %13 = tpu.matmul %11, %10, %cst_11 {dimension_numbers = #tpu.dot_dimension_numbers<[1], [0], [0], [1], [0, 0, 1, 1], [], []>} : vector<32x32xf32>, vector<32x256xf32>, vector<32x256xf32> -> vector<32x256xf32>
    %14 = vector.broadcast %12 : vector<32x1xf32> to vector<32x256xf32>
    %15 = arith.addf %13, %14 : vector<32x256xf32>
    %cst_12 = arith.constant 0.000000e+00 : f32
    %16 = vector.broadcast %cst_12 : f32 to vector<32x256xf32>
    %17 = arith.cmpf ogt, %15, %16 : vector<32x256xf32>
    %cst_13 = arith.constant 0.00999999977 : f32
    %18 = vector.broadcast %cst_13 : f32 to vector<32x256xf32>
    %19 = arith.mulf %18, %15 : vector<32x256xf32>
    %20 = arith.select %17, %15, %19 : vector<32x256xi1>, vector<32x256xf32>
    %c0_14 = arith.constant 0 : index
    %c0_15 = arith.constant 0 : index
    %21 = vector.load %arg6[%c0_14, %c0_15] : memref<4x32xf32, #tpu.memory_space<vmem>>, vector<4x32xf32>
    %c0_16 = arith.constant 0 : index
    %c0_17 = arith.constant 0 : index
    %22 = vector.load %arg7[%c0_16, %c0_17] : memref<4x1xf32, #tpu.memory_space<vmem>>, vector<4x1xf32>
    %cst_18 = arith.constant dense<0.000000e+00> : vector<4x256xf32>
    %23 = tpu.matmul %21, %20, %cst_18 {dimension_numbers = #tpu.dot_dimension_numbers<[1], [0], [0], [1], [0, 0, 1, 1], [], []>} : vector<4x32xf32>, vector<32x256xf32>, vector<4x256xf32> -> vector<4x256xf32>
    %24 = vector.broadcast %22 : vector<4x1xf32> to vector<4x256xf32>
    %25 = arith.addf %23, %24 : vector<4x256xf32>
    %cst_19 = arith.constant -1.000000e+00 : f32
    %cst_20 = arith.constant 1.000000e+00 : f32
    %26 = vector.broadcast %cst_19 : f32 to vector<4x256xf32>
    %27 = arith.maximumf %26, %25 : vector<4x256xf32>
    %28 = vector.broadcast %cst_20 : f32 to vector<4x256xf32>
    %29 = arith.minimumf %28, %27 : vector<4x256xf32>
    %c0_21 = arith.constant 0 : index
    %c0_22 = arith.constant 0 : index
    %30 = vector.load %arg8[%c0_21, %c0_22] : memref<4x256xf32, #tpu.memory_space<vmem>>, vector<4x256xf32>
    tpu.vector_store %arg8[%c0_21, %c0_22], %29 {strides = array<i32>} : memref<4x256xf32, #tpu.memory_space<vmem>>, vector<4x256xf32>,
    return
  }
  func.func @transform_0(%arg0: i32) -> (i32, i32) {
    %c0_i32 = arith.constant 0 : i32
    %c0_i32_0 = arith.constant 0 : i32
    return %c0_i32, %arg0 : i32, i32
  }
  func.func @transform_1(%arg0: i32) -> (i32, i32) {
    %c0_i32 = arith.constant 0 : i32
    %c0_i32_0 = arith.constant 0 : i32
    %c0_i32_1 = arith.constant 0 : i32
    return %c0_i32, %c0_i32_0 : i32, i32
  }
  func.func @transform_2(%arg0: i32) -> (i32, i32) {
    %c0_i32 = arith.constant 0 : i32
    %c0_i32_0 = arith.constant 0 : i32
    %c0_i32_1 = arith.constant 0 : i32
    return %c0_i32, %c0_i32_0 : i32, i32
  }
  func.func @transform_3(%arg0: i32) -> (i32, i32) {
    %c0_i32 = arith.constant 0 : i32
    %c0_i32_0 = arith.constant 0 : i32
    %c0_i32_1 = arith.constant 0 : i32
    return %c0_i32, %c0_i32_0 : i32, i32
  }
  func.func @transform_4(%arg0: i32) -> (i32, i32) {
    %c0_i32 = arith.constant 0 : i32
    %c0_i32_0 = arith.constant 0 : i32
    %c0_i32_1 = arith.constant 0 : i32
    return %c0_i32, %c0_i32_0 : i32, i32
  }
  func.func @transform_5(%arg0: i32) -> (i32, i32) {
    %c0_i32 = arith.constant 0 : i32
    %c0_i32_0 = arith.constant 0 : i32
    %c0_i32_1 = arith.constant 0 : i32
    return %c0_i32, %c0_i32_0 : i32, i32
  }
  func.func @transform_6(%arg0: i32) -> (i32, i32) {
    %c0_i32 = arith.constant 0 : i32
    %c0_i32_0 = arith.constant 0 : i32
    %c0_i32_1 = arith.constant 0 : i32
    return %c0_i32, %c0_i32_0 : i32, i32
  }
  func.func @transform_7(%arg0: i32) -> (i32, i32) {
    %c0_i32 = arith.constant 0 : i32
    %c0_i32_0 = arith.constant 0 : i32
    return %c0_i32, %arg0 : i32, i32
  }
}

</mosaic_0001>

<llo_original>
// kernel: pixelpred_forward.1
$region0: #{pixelpred_forward.1}
  #allocation0 [shape = 'u32[]', space=smem, size = 0x4, offset = 0x4, fixed_abs, tag = 'smem constant byte address 0x4 - core index']
  #allocation1 [shape = 'u32[144,128]{1,0:T(1,128)}', space=vmem, size = 0x12000, scoped, tag = 'internal scratch']
  %s0 = inlined_call_operand.vmem [shape: f32[8,512], index: 0, kind: input, shape index: {}]
  %s1 = inlined_call_operand.vmem [shape: f32[32,8], index: 1, kind: input, shape index: {}]
  %s2 = inlined_call_operand.vmem [shape: f32[32,1], index: 2, kind: input, shape index: {}]
  %s3 = inlined_call_operand.vmem [shape: f32[32,32], index: 3, kind: input, shape index: {}]
  %s4 = inlined_call_operand.vmem [shape: f32[32,1], index: 4, kind: input, shape index: {}]
  %s5 = inlined_call_operand.vmem [shape: f32[4,32], index: 5, kind: input, shape index: {}]
  %s6 = inlined_call_operand.vmem [shape: f32[4,1], index: 6, kind: input, shape index: {}]
  %s7 = inlined_call_operand.vmem [shape: f32[4,512], index: 7, kind: output, shape index: {}]
  %s8 = sld [smem:[#allocation0]]
  $region61: #{pixelpred_forward.1} parent=0
    _
  %s10 = ssub.s32 1, %s8
  %s11 = scalar_select 0, %s10, %s8
  loop: start=0, step=1, limit=4
  $region2: #{pixelpred_forward.1} parent=0 // loop_pre_header
    _
  $region3: #{pixelpred_forward.1} parent=0 // loop_header
    %s13 = sphi 0, %s17
    %p14 = scmp.ge.s32.totalorder %s13, 4
    %s23 = sphi 0, %s25
    %s26 = sphi 0, %s23
    %s27 = sphi 0, %s26
    %s43 = sphi 0, %s27
    %s47 = sphi 0, %s47
    %s49 = sphi 0, %s47
    %s50 = sphi 0, %s49
    %s64 = sphi 0, %s50
    %s68 = sphi 0, %s68
    %s70 = sphi 0, %s68
    %s71 = sphi 0, %s70
    %s85 = sphi 0, %s71
    %s89 = sphi 0, %s89
    %s91 = sphi 0, %s89
    %s92 = sphi 0, %s91
    %s106 = sphi 0, %s92
    %s110 = sphi 0, %s110
    %s112 = sphi 0, %s110
    %s113 = sphi 0, %s112
    %s127 = sphi 0, %s113
    %s131 = sphi 0, %s131
    %s133 = sphi 0, %s131
    %s134 = sphi 0, %s133
    %s148 = sphi 0, %s134
    %s152 = sphi 0, %s152
    %s154 = sphi 0, %s152
    %s155 = sphi 0, %s154
    %s169 = sphi 0, %s155
    %s175 = sphi 0, %s177
    %s178 = sphi 0, %s175
    %s179 = sphi 0, %s178
    %s195 = sphi 0, %s179
  $region4: #{pixelpred_forward.1} parent=0 // loop_header_branch
    %16 = sbr.rel (%p14) target = $region8
  $region5: #{pixelpred_forward.1} parent=0 // loop_body
    %s18 = ssub.s32 %s13, 1
    %s19 = ssub.s32 %s13, 2
    %s20 = sadd.s32 %s13, 1
    %s21 = ssub.s32 %s13, %s20
    %p22 = scmp.eq.s32.totalorder %s21, 0
    %s24 = sadd.s32 %s23, 1
    %s25 = scalar_select %p22, %s23, %s24
    %p28 = pneg %p22
    %p29 = scmp.eq.s32.totalorder %s13, 1
    %p30 = por %p28, %p29
    %p31 = scmp.ne.s32.totalorder %s23, %s26
    %p32 = scmp.eq.s32.totalorder %s13, 0
    %p33 = por %p31, %p32
    %p34 = scmp.ne.s32.totalorder %s23, %s26
    %p35 = scmp.eq.s32.totalorder %s18, 1
    %p36 = por %p34, %p35
    %p37 = scmp.ne.s32.totalorder %s26, %s27
    %p38 = scmp.eq.s32.totalorder %s18, 0
    %p39 = por %p37, %p38
    %p40 = scmp.ne.s32.totalorder %s26, %s27
    %p41 = scmp.eq.s32.totalorder %s19, 1
    %p42 = por %p40, %p41
    %p44 = scmp.ne.s32.totalorder %s27, %s43
    %p45 = scmp.eq.s32.totalorder %s19, 0
    %p46 = por %p44, %p45
    %s48 = sadd.s32 %s47, 1
    %p51 = scmp.eq.s32.totalorder %s13, 1
    %p52 = scmp.ne.s32.totalorder %s47, %s49
    %p53 = scmp.eq.s32.totalorder %s13, 0
    %p54 = por %p52, %p53
    %p55 = scmp.ne.s32.totalorder %s47, %s49
    %p56 = scmp.eq.s32.totalorder %s18, 1
    %p57 = por %p55, %p56
    %p58 = scmp.ne.s32.totalorder %s49, %s50
    %p59 = scmp.eq.s32.totalorder %s18, 0
    %p60 = por %p58, %p59
    %p61 = scmp.ne.s32.totalorder %s49, %s50
    %p62 = scmp.eq.s32.totalorder %s19, 1
    %p63 = por %p61, %p62
    %p65 = scmp.ne.s32.totalorder %s50, %s64
    %p66 = scmp.eq.s32.totalorder %s19, 0
    %p67 = por %p65, %p66
    %s69 = sadd.s32 %s68, 1
    %p72 = scmp.eq.s32.totalorder %s13, 1
    %p73 = scmp.ne.s32.totalorder %s68, %s70
    %p74 = scmp.eq.s32.totalorder %s13, 0
    %p75 = por %p73, %p74
    %p76 = scmp.ne.s32.totalorder %s68, %s70
    %p77 = scmp.eq.s32.totalorder %s18, 1
    %p78 = por %p76, %p77
    %p79 = scmp.ne.s32.totalorder %s70, %s71
    %p80 = scmp.eq.s32.totalorder %s18, 0
    %p81 = por %p79, %p80
    %p82 = scmp.ne.s32.totalorder %s70, %s71
    %p83 = scmp.eq.s32.totalorder %s19, 1
    %p84 = por %p82, %p83
    %p86 = scmp.ne.s32.totalorder %s71, %s85
    %p87 = scmp.eq.s32.totalorder %s19, 0
    %p88 = por %p86, %p87
    %s90 = sadd.s32 %s89, 1
    %p93 = scmp.eq.s32.totalorder %s13, 1
    %p94 = scmp.ne.s32.totalorder %s89, %s91
    %p95 = scmp.eq.s32.totalorder %s13, 0
    %p96 = por %p94, %p95
    %p97 = scmp.ne.s32.totalorder %s89, %s91
    %p98 = scmp.eq.s32.totalorder %s18, 1
    %p99 = por %p97, %p98
    %p100 = scmp.ne.s32.totalorder %s91, %s92
    %p101 = scmp.eq.s32.totalorder %s18, 0
    %p102 = por %p100, %p101
    %p103 = scmp.ne.s32.totalorder %s91, %s92
    %p104 = scmp.eq.s32.totalorder %s19, 1
    %p105 = por %p103, %p104
    %p107 = scmp.ne.s32.totalorder %s92, %s106
    %p108 = scmp.eq.s32.totalorder %s19, 0
    %p109 = por %p107, %p108
    %s111 = sadd.s32 %s110, 1
    %p114 = scmp.eq.s32.totalorder %s13, 1
    %p115 = scmp.ne.s32.totalorder %s110, %s112
    %p116 = scmp.eq.s32.totalorder %s13, 0
    %p117 = por %p115, %p116
    %p118 = scmp.ne.s32.totalorder %s110, %s112
    %p119 = scmp.eq.s32.totalorder %s18, 1
    %p120 = por %p118, %p119
    %p121 = scmp.ne.s32.totalorder %s112, %s113
    %p122 = scmp.eq.s32.totalorder %s18, 0
    %p123 = por %p121, %p122
    %p124 = scmp.ne.s32.totalorder %s112, %s113
    %p125 = scmp.eq.s32.totalorder %s19, 1
    %p126 = por %p124, %p125
    %p128 = scmp.ne.s32.totalorder %s113, %s127
    %p129 = scmp.eq.s32.totalorder %s19, 0
    %p130 = por %p128, %p129
    %s132 = sadd.s32 %s131, 1
    %p135 = scmp.eq.s32.totalorder %s13, 1
    %p136 = scmp.ne.s32.totalorder %s131, %s133
    %p137 = scmp.eq.s32.totalorder %s13, 0
    %p138 = por %p136, %p137
    %p139 = scmp.ne.s32.totalorder %s131, %s133
    %p140 = scmp.eq.s32.totalorder %s18, 1
    %p141 = por %p139, %p140
    %p142 = scmp.ne.s32.totalorder %s133, %s134
    %p143 = scmp.eq.s32.totalorder %s18, 0
    %p144 = por %p142, %p143
    %p145 = scmp.ne.s32.totalorder %s133, %s134
    %p146 = scmp.eq.s32.totalorder %s19, 1
    %p147 = por %p145, %p146
    %p149 = scmp.ne.s32.totalorder %s134, %s148
    %p150 = scmp.eq.s32.totalorder %s19, 0
    %p151 = por %p149, %p150
    %s153 = sadd.s32 %s152, 1
    %p156 = scmp.eq.s32.totalorder %s13, 1
    %p157 = scmp.ne.s32.totalorder %s152, %s154
    %p158 = scmp.eq.s32.totalorder %s13, 0
    %p159 = por %p157, %p158
    %p160 = scmp.ne.s32.totalorder %s152, %s154
    %p161 = scmp.eq.s32.totalorder %s18, 1
    %p162 = por %p160, %p161
    %p163 = scmp.ne.s32.totalorder %s154, %s155
    %p164 = scmp.eq.s32.totalorder %s18, 0
    %p165 = por %p163, %p164
    %p166 = scmp.ne.s32.totalorder %s154, %s155
    %p167 = scmp.eq.s32.totalorder %s19, 1
    %p168 = por %p166, %p167
    %p170 = scmp.ne.s32.totalorder %s155, %s169
    %p171 = scmp.eq.s32.totalorder %s19, 0
    %p172 = por %p170, %p171
    %s173 = ssub.s32 %s13, %s20
    %p174 = scmp.eq.s32.totalorder %s173, 0
    %s176 = sadd.s32 %s175, 1
    %s177 = scalar_select %p174, %s175, %s176
    %p180 = pneg %p174
    %p181 = scmp.eq.s32.totalorder %s13, 1
    %p182 = por %p180, %p181
    %p183 = scmp.ne.s32.totalorder %s175, %s178
    %p184 = scmp.eq.s32.totalorder %s13, 0
    %p185 = por %p183, %p184
    %p186 = scmp.ne.s32.totalorder %s175, %s178
    %p187 = scmp.eq.s32.totalorder %s18, 1
    %p188 = por %p186, %p187
    %p189 = scmp.ne.s32.totalorder %s178, %s179
    %p190 = scmp.eq.s32.totalorder %s18, 0
    %p191 = por %p189, %p190
    %p192 = scmp.ne.s32.totalorder %s178, %s179
    %p193 = scmp.eq.s32.totalorder %s19, 1
    %p194 = por %p192, %p193
    %p196 = scmp.ne.s32.totalorder %s179, %s195
    %p197 = scmp.eq.s32.totalorder %s19, 0
    %p198 = por %p196, %p197
    %p199 = scmp.le.s32.totalorder 1, %s13
    %p200 = scmp.lt.s32.totalorder %s13, 3
    %p201 = pnand %p199, %p200
    %p202 = pneg %p201
    // Predicated region
    $region9: #{pixelpred_forward.1} parent=5 // pred_check
      _
    $region10: #{pixelpred_forward.1} parent=5 // pred_check_branch
      %204 = sbr.rel (%p201) target = $region12
    $region11: #{pixelpred_forward.1} parent=5 // pred_region
      %s205 = ssub.s32 %s13, 1
      // Predicated region
      $region13: #{pixelpred_forward.1} parent=11 // pred_check
        %p206 = pneg %p60
      $region14: #{pixelpred_forward.1} parent=11 // pred_check_branch
        %208 = sbr.rel (%p206) target = $region16
      $region15: #{pixelpred_forward.1} parent=11 // pred_region
        _
      $region16: #{pixelpred_forward.1} parent=11 // pred_fallthru
        _
      // Predicated region
      $region17: #{pixelpred_forward.1} parent=11 // pred_check
        %p209 = pneg %p81
      $region18: #{pixelpred_forward.1} parent=11 // pred_check_branch
        %211 = sbr.rel (%p209) target = $region20
      $region19: #{pixelpred_forward.1} parent=11 // pred_region
        _
      $region20: #{pixelpred_forward.1} parent=11 // pred_fallthru
        _
      // Predicated region
      $region21: #{pixelpred_forward.1} parent=11 // pred_check
        %p212 = pneg %p102
      $region22: #{pixelpred_forward.1} parent=11 // pred_check_branch
        %214 = sbr.rel (%p212) target = $region24
      $region23: #{pixelpred_forward.1} parent=11 // pred_region
        _
      $region24: #{pixelpred_forward.1} parent=11 // pred_fallthru
        _
      // Predicated region
      $region25: #{pixelpred_forward.1} parent=11 // pred_check
        %p215 = pneg %p123
      $region26: #{pixelpred_forward.1} parent=11 // pred_check_branch
        %217 = sbr.rel (%p215) target = $region28
      $region27: #{pixelpred_forward.1} parent=11 // pred_region
        _
      $region28: #{pixelpred_forward.1} parent=11 // pred_fallthru
        _
      // Predicated region
      $region29: #{pixelpred_forward.1} parent=11 // pred_check
        %p218 = pneg %p144
      $region30: #{pixelpred_forward.1} parent=11 // pred_check_branch
        %220 = sbr.rel (%p218) target = $region32
      $region31: #{pixelpred_forward.1} parent=11 // pred_region
        _
      $region32: #{pixelpred_forward.1} parent=11 // pred_fallthru
        _
      // Predicated region
      $region33: #{pixelpred_forward.1} parent=11 // pred_check
        %p221 = pneg %p165
      $region34: #{pixelpred_forward.1} parent=11 // pred_check_branch
        %223 = sbr.rel (%p221) target = $region36
      $region35: #{pixelpred_forward.1} parent=11 // pred_region
        _
      $region36: #{pixelpred_forward.1} parent=11 // pred_fallthru
        _
    $region12: #{pixelpred_forward.1} parent=5 // pred_fallthru
      _
    %p224 = scmp.lt.s32.totalorder %s13, 2
    // Predicated region
    $region37: #{pixelpred_forward.1} parent=5 // pred_check
      %p225 = pneg %p224
    $region38: #{pixelpred_forward.1} parent=5 // pred_check_branch
      %227 = sbr.rel (%p225) target = $region40
    $region39: #{pixelpred_forward.1} parent=5 // pred_region
      // Predicated region
      $region41: #{pixelpred_forward.1} parent=39 // pred_check
        %p228 = pneg %p33
      $region42: #{pixelpred_forward.1} parent=39 // pred_check_branch
        %230 = sbr.rel (%p228) target = $region44
      $region43: #{pixelpred_forward.1} parent=39 // pred_region
        %s231 = smul.u32 2, %s13
        %p232 = scmp.lt.s32.totalorder %s231, 3
        %s233 = scalar_select %p232, %s231, 3
        %s234 = smul.addr %s233, 8
        %s235 = scalar_lea.vmem %s0, %s234
        %s236 = smul.u32 2, %s13
      $region44: #{pixelpred_forward.1} parent=39 // pred_fallthru
        _
    $region40: #{pixelpred_forward.1} parent=5 // pred_fallthru
      _
    %p237 = scmp.le.s32.totalorder 1, %s13
    %p238 = scmp.lt.s32.totalorder %s13, 3
    %p239 = pnand %p237, %p238
    %p240 = pneg %p239
    // Predicated region
    $region45: #{pixelpred_forward.1} parent=5 // pred_check
      _
    $region46: #{pixelpred_forward.1} parent=5 // pred_check_branch
      %242 = sbr.rel (%p239) target = $region48
    $region47: #{pixelpred_forward.1} parent=5 // pred_region
      %s243 = ssub.s32 %s13, 1
      %s244 = smul.u32 2, %s18
      %p245 = scmp.lt.s32.totalorder %s244, 3
      %s246 = scalar_select %p245, %s244, 3
      %s247 = smul.addr %s246, 8
      %s248 = scalar_lea.vmem %s0, %s247
      %p249 = pneg %p39
      %p250 = pneg %p36
      %p251 = pneg %p60
      %p252 = pneg %p57
      %p253 = pneg %p81
      %p254 = pneg %p78
      %p255 = pneg %p102
      %p256 = pneg %p99
      %p257 = pneg %p123
      %p258 = pneg %p120
      %p259 = pneg %p144
      %p260 = pneg %p141
      %p261 = pneg %p165
      %p262 = pneg %p162
      %p263 = pneg %p191
      %p264 = pneg %p188
      %s265 = smul.u32 2, %s18
      %p266 = scmp.lt.s32.totalorder %s265, 3
      %s267 = scalar_select %p266, %s265, 3
      %s268 = smul.addr %s267, 4
      %s269 = scalar_lea.vmem %s7, %s268
      %s270 = smul.u32 2, %s18
      %p271 = scmp.lt.s32.totalorder %s270, 3
      %s272 = scalar_select %p271, %s270, 3
      %s273 = smul.addr %s272, 8
      %s274 = scalar_lea.vmem %s0, %s273
      %s275 = smul.u32 2, %s18
      %s276 = smul.u32 2, %s18
      %p277 = scmp.lt.s32.totalorder %s276, 3
      %s278 = scalar_select %p277, %s276, 3
      %s279 = smul.addr %s278, 4
      %s280 = scalar_lea.vmem %s7, %s279
      %s281 = smul.u32 2, %s18
      %v282 = vld [vmem:[%s274] sm:$0xff]
      %v283 = vld [vmem:[%s274 + $0x8] sm:$0xff]
      %v284 = vld [vmem:[%s1] sm:$0xff]
      %v285 = vld [vmem:[%s1 + $0x8] sm:$0xff]
      %v286 = vld [vmem:[%s1 + $0x10] sm:$0xff]
      %v287 = vld [vmem:[%s1 + $0x18] sm:$0xff]
      %v288 = vld [vmem:[%s2] sm:$0xff]
      %v289 = vld [vmem:[%s2 + $0x8] sm:$0xff]
      %v290 = vld [vmem:[%s2 + $0x10] sm:$0xff]
      %v291 = vld [vmem:[%s2 + $0x18] sm:$0xff]
      %293 = vset.pattern.permute.xlu0 0
      %294 = vperm.xlu0 %293, %v288
      %v295 = vpop.permute.xlu0 %294
      %298 = vset.pattern.permute.xlu0 0
      %299 = vperm.xlu0 %298, %v289
      %v300 = vpop.permute.xlu0 %299
      %303 = vset.pattern.permute.xlu0 0
      %304 = vperm.xlu0 %303, %v290
      %v305 = vpop.permute.xlu0 %304
      %308 = vset.pattern.permute.xlu0 0
      %309 = vperm.xlu0 %308, %v291
      %v310 = vpop.permute.xlu0 %309
      %vm312 = vcmask 64512
      %v314 = vsel %vm312, %v284, 0
      %v317 = vsel %vm312, %v285, 0
      %v320 = vsel %vm312, %v286, 0
      %v323 = vsel %vm312, %v287, 0
      %325 = vmatprep.subr.mxu0 %v283
      %326 = vmatpush1.msra.mxu0 %v282
      %327 = vmatprep.subr.mxu0 0.0
      %328 = vmatpush1.msra.mxu0 0.0
      %329 = vmatprep.subr.mxu0 0.0
      %330 = vmatpush1.msra.mxu0 0.0
      %331 = vmatprep.subr.mxu0 0.0
      %332 = vmatpush1.msra.mxu0 0.0
      %333 = vmatprep.subr.mxu0 0.0
      %334 = vmatpush1.msra.mxu0 0.0
      %335 = vmatprep.subr.mxu0 0.0
      %336 = vmatpush1.msra.mxu0 0.0
      %337 = vmatprep.subr.mxu0 0.0
      %338 = vmatpush1.msra.mxu0 0.0
      %339 = vmatprep.subr.mxu0 0.0
      %340 = vmatpush1.msra.mxu0 0.0
      %341 = vmatprep.subr.mxu0 0.0
      %342 = vmatpush1.msra.mxu0 0.0
      %343 = vmatprep.subr.mxu0 0.0
      %344 = vmatpush1.msra.mxu0 0.0
      %345 = vmatprep.subr.mxu0 0.0
      %346 = vmatpush1.msra.mxu0 0.0
      %347 = vmatprep.subr.mxu0 0.0
      %348 = vmatpush1.msra.mxu0 0.0
      %349 = vmatprep.subr.mxu0 0.0
      %350 = vmatpush1.msra.mxu0 0.0
      %351 = vmatprep.subr.mxu0 0.0
      %352 = vmatpush1.msra.mxu0 0.0
      %353 = vmatprep.subr.mxu0 0.0
      %354 = vmatpush1.msra.mxu0 0.0
      %355 = vmatprep.subr.mxu0 0.0
      %356 = vmatpush1.msra.mxu0 0.0
      %357 = vmatprep.subr.mxu0 0.0
      %358 = vmatpush1.msra.mxu0 0.0
      %359 = vmatprep.subr.mxu0 0.0
      %360 = vmatpush1.msra.mxu0 0.0
      %361 = vmatprep.subr.mxu0 0.0
      %362 = vmatpush1.msra.mxu0 0.0
      %363 = vmatprep.subr.mxu0 0.0
      %364 = vmatpush1.msra.mxu0 0.0
      %365 = vmatprep.subr.mxu0 0.0
      %366 = vmatpush1.msra.mxu0 0.0
      %367 = vmatprep.subr.mxu0 0.0
      %368 = vmatpush1.msra.mxu0 0.0
      %369 = vmatprep.subr.mxu0 0.0
      %370 = vmatpush1.msra.mxu0 0.0
      %371 = vmatprep.subr.mxu0 0.0
      %372 = vmatpush1.msra.mxu0 0.0
      %373 = vmatprep.subr.mxu0 0.0
      %374 = vmatpush1.msra.mxu0 0.0
      %375 = vmatprep.subr.mxu0 0.0
      %376 = vmatpush1.msra.mxu0 0.0
      %377 = vmatprep.subr.mxu0 0.0
      %378 = vmatpush1.msra.mxu0 0.0
      %379 = vmatprep.subr.mxu0 0.0
      %380 = vmatpush1.msra.mxu0 0.0
      %381 = vmatprep.subr.mxu0 0.0
      %382 = vmatpush1.msra.mxu0 0.0
      %383 = vmatprep.subr.mxu0 0.0
      %384 = vmatpush1.msra.mxu0 0.0
      %385 = vmatprep.subr.mxu0 0.0
      %386 = vmatpush1.msra.mxu0 0.0
      %387 = vmatprep.subr.mxu0 0.0
      %388 = vmatpush1.msra.mxu0 0.0
      %389 = vmatprep.mubr.f32.mxu0 0.0
      %390 = vmatmul.mubr.f32.gmra.mrb[0].mxu0 %v314
      %v391 = vpop.f32.mrb[0].mxu0
      %v392 = vadd.f32 %v295, %v391
      %v393 = vpop.f32.mrb[0].mxu0
      %v394 = vadd.f32 %v295, %v393
      %395 = vmatprep.mubr.f32.mxu0 0.0
      %396 = vmatmul.mubr.f32.gmra.mrb[0].mxu0 %v317
      %v397 = vpop.f32.mrb[0].mxu0
      %v398 = vadd.f32 %v300, %v397
      %v399 = vpop.f32.mrb[0].mxu0
      %v400 = vadd.f32 %v300, %v399
      %401 = vmatprep.mubr.f32.mxu0 0.0
      %402 = vmatmul.mubr.f32.gmra.mrb[0].mxu0 %v320
      %v403 = vpop.f32.mrb[0].mxu0
      %v404 = vadd.f32 %v305, %v403
      %v405 = vpop.f32.mrb[0].mxu0
      %v406 = vadd.f32 %v305, %v405
      %407 = vmatprep.mubr.f32.mxu0 0.0
      %408 = vmatmul.mubr.f32.gmra.mrb[0].mxu0 %v323
      %v409 = vpop.f32.mrb[0].mxu0
      %v410 = vadd.f32 %v310, %v409
      %v411 = vpop.f32.mrb[0].mxu0
      %v412 = vadd.f32 %v310, %v411
      %413 = vdwg.mxu0
      %vm414 = vcmp.gt.f32.partialorder %v392, 0.0
      %vm415 = vcmp.gt.f32.partialorder %v394, 0.0
      %vm416 = vcmp.gt.f32.partialorder %v398, 0.0
      %vm417 = vcmp.gt.f32.partialorder %v400, 0.0
      %vm418 = vcmp.gt.f32.partialorder %v404, 0.0
      %vm419 = vcmp.gt.f32.partialorder %v406, 0.0
      %vm420 = vcmp.gt.f32.partialorder %v410, 0.0
      %vm421 = vcmp.gt.f32.partialorder %v412, 0.0
      %v422 = vmul.f32 %v392, 0.01
      %v423 = vmul.f32 %v394, 0.01
      %v424 = vmul.f32 %v398, 0.01
      %v425 = vmul.f32 %v400, 0.01
      %v426 = vmul.f32 %v404, 0.01
      %v427 = vmul.f32 %v406, 0.01
      %v428 = vmul.f32 %v410, 0.01
      %v429 = vmul.f32 %v412, 0.01
      %v430 = vsel %vm414, %v392, %v422
      %v431 = vsel %vm415, %v394, %v423
      %v432 = vsel %vm416, %v398, %v424
      %v433 = vsel %vm417, %v400, %v425
      %v434 = vsel %vm418, %v404, %v426
      %v435 = vsel %vm419, %v406, %v427
      %v436 = vsel %vm420, %v410, %v428
      %v437 = vsel %vm421, %v412, %v429
      %v438 = vld [vmem:[%s3] sm:$0xff]
      %v439 = vld [vmem:[%s3 + $0x8] sm:$0xff]
      %v440 = vld [vmem:[%s3 + $0x10] sm:$0xff]
      %v441 = vld [vmem:[%s3 + $0x18] sm:$0xff]
      %v442 = vld [vmem:[%s4] sm:$0xff]
      %v443 = vld [vmem:[%s4 + $0x8] sm:$0xff]
      %v444 = vld [vmem:[%s4 + $0x10] sm:$0xff]
      %v445 = vld [vmem:[%s4 + $0x18] sm:$0xff]
      %447 = vset.pattern.permute.xlu0 0
      %448 = vperm.xlu0 %447, %v442
      %v449 = vpop.permute.xlu0 %448
      %452 = vset.pattern.permute.xlu0 0
      %453 = vperm.xlu0 %452, %v443
      %v454 = vpop.permute.xlu0 %453
      %457 = vset.pattern.permute.xlu0 0
      %458 = vperm.xlu0 %457, %v444
      %v459 = vpop.permute.xlu0 %458
      %462 = vset.pattern.permute.xlu0 0
      %463 = vperm.xlu0 %462, %v445
      %v464 = vpop.permute.xlu0 %463
      %vm466 = vcmask 261120
      %v468 = vsel %vm466, %v438, 0
      %v471 = vsel %vm466, %v439, 0
      %v474 = vsel %vm466, %v440, 0
      %v477 = vsel %vm466, %v441, 0
      %479 = vmatprep.subr.mxu0 %v431
      %480 = vmatpush1.msra.mxu0 %v430
      %481 = vmatprep.subr.mxu0 %v433
      %482 = vmatpush1.msra.mxu0 %v432
      %483 = vmatprep.subr.mxu0 %v435
      %484 = vmatpush1.msra.mxu0 %v434
      %485 = vmatprep.subr.mxu0 %v437
      %486 = vmatpush1.msra.mxu0 %v436
      %487 = vmatprep.subr.mxu0 0.0
      %488 = vmatpush1.msra.mxu0 0.0
      %489 = vmatprep.subr.mxu0 0.0
      %490 = vmatpush1.msra.mxu0 0.0
      %491 = vmatprep.subr.mxu0 0.0
      %492 = vmatpush1.msra.mxu0 0.0
      %493 = vmatprep.subr.mxu0 0.0
      %494 = vmatpush1.msra.mxu0 0.0
      %495 = vmatprep.subr.mxu0 0.0
      %496 = vmatpush1.msra.mxu0 0.0
      %497 = vmatprep.subr.mxu0 0.0
      %498 = vmatpush1.msra.mxu0 0.0
      %499 = vmatprep.subr.mxu0 0.0
      %500 = vmatpush1.msra.mxu0 0.0
      %501 = vmatprep.subr.mxu0 0.0
      %502 = vmatpush1.msra.mxu0 0.0
      %503 = vmatprep.subr.mxu0 0.0
      %504 = vmatpush1.msra.mxu0 0.0
      %505 = vmatprep.subr.mxu0 0.0
      %506 = vmatpush1.msra.mxu0 0.0
      %507 = vmatprep.subr.mxu0 0.0
      %508 = vmatpush1.msra.mxu0 0.0
      %509 = vmatprep.subr.mxu0 0.0
      %510 = vmatpush1.msra.mxu0 0.0
      %511 = vmatprep.subr.mxu0 0.0
      %512 = vmatpush1.msra.mxu0 0.0
      %513 = vmatprep.subr.mxu0 0.0
      %514 = vmatpush1.msra.mxu0 0.0
      %515 = vmatprep.subr.mxu0 0.0
      %516 = vmatpush1.msra.mxu0 0.0
      %517 = vmatprep.subr.mxu0 0.0
      %518 = vmatpush1.msra.mxu0 0.0
      %519 = vmatprep.subr.mxu0 0.0
      %520 = vmatpush1.msra.mxu0 0.0
      %521 = vmatprep.subr.mxu0 0.0
      %522 = vmatpush1.msra.mxu0 0.0
      %523 = vmatprep.subr.mxu0 0.0
      %524 = vmatpush1.msra.mxu0 0.0
      %525 = vmatprep.subr.mxu0 0.0
      %526 = vmatpush1.msra.mxu0 0.0
      %527 = vmatprep.subr.mxu0 0.0
      %528 = vmatpush1.msra.mxu0 0.0
      %529 = vmatprep.subr.mxu0 0.0
      %530 = vmatpush1.msra.mxu0 0.0
      %531 = vmatprep.subr.mxu0 0.0
      %532 = vmatpush1.msra.mxu0 0.0
      %533 = vmatprep.subr.mxu0 0.0
      %534 = vmatpush1.msra.mxu0 0.0
      %535 = vmatprep.subr.mxu0 0.0
      %536 = vmatpush1.msra.mxu0 0.0
      %537 = vmatprep.subr.mxu0 0.0
      %538 = vmatpush1.msra.mxu0 0.0
      %539 = vmatprep.subr.mxu0 0.0
      %540 = vmatpush1.msra.mxu0 0.0
      %541 = vmatprep.subr.mxu0 0.0
      %542 = vmatpush1.msra.mxu0 0.0
      %543 = vmatprep.mubr.f32.mxu0 0.0
      %544 = vmatmul.mubr.f32.gmra.mrb[0].mxu0 %v468
      %v545 = vpop.f32.mrb[0].mxu0
      %v546 = vadd.f32 %v449, %v545
      %v547 = vpop.f32.mrb[0].mxu0
      %v548 = vadd.f32 %v449, %v547
      %549 = vmatprep.mubr.f32.mxu0 0.0
      %550 = vmatmul.mubr.f32.gmra.mrb[0].mxu0 %v471
      %v551 = vpop.f32.mrb[0].mxu0
      %v552 = vadd.f32 %v454, %v551
      %v553 = vpop.f32.mrb[0].mxu0
      %v554 = vadd.f32 %v454, %v553
      %555 = vmatprep.mubr.f32.mxu0 0.0
      %556 = vmatmul.mubr.f32.gmra.mrb[0].mxu0 %v474
      %v557 = vpop.f32.mrb[0].mxu0
      %v558 = vadd.f32 %v459, %v557
      %v559 = vpop.f32.mrb[0].mxu0
      %v560 = vadd.f32 %v459, %v559
      %561 = vmatprep.mubr.f32.mxu0 0.0
      %562 = vmatmul.mubr.f32.gmra.mrb[0].mxu0 %v477
      %v563 = vpop.f32.mrb[0].mxu0
      %v564 = vadd.f32 %v464, %v563
      %v565 = vpop.f32.mrb[0].mxu0
      %v566 = vadd.f32 %v464, %v565
      %567 = vdwg.mxu0
      %vm568 = vcmp.gt.f32.partialorder %v546, 0.0
      %vm569 = vcmp.gt.f32.partialorder %v548, 0.0
      %vm570 = vcmp.gt.f32.partialorder %v552, 0.0
      %vm571 = vcmp.gt.f32.partialorder %v554, 0.0
      %vm572 = vcmp.gt.f32.partialorder %v558, 0.0
      %vm573 = vcmp.gt.f32.partialorder %v560, 0.0
      %vm574 = vcmp.gt.f32.partialorder %v564, 0.0
      %vm575 = vcmp.gt.f32.partialorder %v566, 0.0
      %v576 = vmul.f32 %v546, 0.01
      %v577 = vmul.f32 %v548, 0.01
      %v578 = vmul.f32 %v552, 0.01
      %v579 = vmul.f32 %v554, 0.01
      %v580 = vmul.f32 %v558, 0.01
      %v581 = vmul.f32 %v560, 0.01
      %v582 = vmul.f32 %v564, 0.01
      %v583 = vmul.f32 %v566, 0.01
      %v584 = vsel %vm568, %v546, %v576
      %v585 = vsel %vm569, %v548, %v577
      %v586 = vsel %vm570, %v552, %v578
      %v587 = vsel %vm571, %v554, %v579
      %v588 = vsel %vm572, %v558, %v580
      %v589 = vsel %vm573, %v560, %v581
      %v590 = vsel %vm574, %v564, %v582
      %v591 = vsel %vm575, %v566, %v583
      %v592 = vld [vmem:[%s5] sm:$0xf]
      %v593 = vld [vmem:[%s6] sm:$0xf]
      %595 = vset.pattern.permute.xlu0 0
      %596 = vperm.xlu0 %595, %v593
      %v597 = vpop.permute.xlu0 %596
      %v600 = vsel %vm466, %v592, 0
      %602 = vmatprep.subr.mxu0 %v585
      %603 = vmatpush1.msra.mxu0 %v584
      %604 = vmatprep.subr.mxu0 %v587
      %605 = vmatpush1.msra.mxu0 %v586
      %606 = vmatprep.subr.mxu0 %v589
      %607 = vmatpush1.msra.mxu0 %v588
      %608 = vmatprep.subr.mxu0 %v591
      %609 = vmatpush1.msra.mxu0 %v590
      %610 = vmatprep.subr.mxu0 0.0
      %611 = vmatpush1.msra.mxu0 0.0
      %612 = vmatprep.subr.mxu0 0.0
      %613 = vmatpush1.msra.mxu0 0.0
      %614 = vmatprep.subr.mxu0 0.0
      %615 = vmatpush1.msra.mxu0 0.0
      %616 = vmatprep.subr.mxu0 0.0
      %617 = vmatpush1.msra.mxu0 0.0
      %618 = vmatprep.subr.mxu0 0.0
      %619 = vmatpush1.msra.mxu0 0.0
      %620 = vmatprep.subr.mxu0 0.0
      %621 = vmatpush1.msra.mxu0 0.0
      %622 = vmatprep.subr.mxu0 0.0
      %623 = vmatpush1.msra.mxu0 0.0
      %624 = vmatprep.subr.mxu0 0.0
      %625 = vmatpush1.msra.mxu0 0.0
      %626 = vmatprep.subr.mxu0 0.0
      %627 = vmatpush1.msra.mxu0 0.0
      %628 = vmatprep.subr.mxu0 0.0
      %629 = vmatpush1.msra.mxu0 0.0
      %630 = vmatprep.subr.mxu0 0.0
      %631 = vmatpush1.msra.mxu0 0.0
      %632 = vmatprep.subr.mxu0 0.0
      %633 = vmatpush1.msra.mxu0 0.0
      %634 = vmatprep.subr.mxu0 0.0
      %635 = vmatpush1.msra.mxu0 0.0
      %636 = vmatprep.subr.mxu0 0.0
      %637 = vmatpush1.msra.mxu0 0.0
      %638 = vmatprep.subr.mxu0 0.0
      %639 = vmatpush1.msra.mxu0 0.0
      %640 = vmatprep.subr.mxu0 0.0
      %641 = vmatpush1.msra.mxu0 0.0
      %642 = vmatprep.subr.mxu0 0.0
      %643 = vmatpush1.msra.mxu0 0.0
      %644 = vmatprep.subr.mxu0 0.0
      %645 = vmatpush1.msra.mxu0 0.0
      %646 = vmatprep.subr.mxu0 0.0
      %647 = vmatpush1.msra.mxu0 0.0
      %648 = vmatprep.subr.mxu0 0.0
      %649 = vmatpush1.msra.mxu0 0.0
      %650 = vmatprep.subr.mxu0 0.0
      %651 = vmatpush1.msra.mxu0 0.0
      %652 = vmatprep.subr.mxu0 0.0
      %653 = vmatpush1.msra.mxu0 0.0
      %654 = vmatprep.subr.mxu0 0.0
      %655 = vmatpush1.msra.mxu0 0.0
      %656 = vmatprep.subr.mxu0 0.0
      %657 = vmatpush1.msra.mxu0 0.0
      %658 = vmatprep.subr.mxu0 0.0
      %659 = vmatpush1.msra.mxu0 0.0
      %660 = vmatprep.subr.mxu0 0.0
      %661 = vmatpush1.msra.mxu0 0.0
      %662 = vmatprep.subr.mxu0 0.0
      %663 = vmatpush1.msra.mxu0 0.0
      %664 = vmatprep.subr.mxu0 0.0
      %665 = vmatpush1.msra.mxu0 0.0
      %666 = vmatprep.mubr.f32.mxu0 0.0
      %667 = vmatmul.mubr.f32.gmra.mrb[0].mxu0 %v600
      %v668 = vpop.f32.mrb[0].mxu0
      %v669 = vadd.f32 %v597, %v668
      %v670 = vpop.f32.mrb[0].mxu0
      %v671 = vadd.f32 %v597, %v670
      %672 = vdwg.mxu0
      %v673 = vmax.f32 %v669, -1.0
      %v674 = vmax.f32 %v671, -1.0
      %v675 = vmin.f32 %v673, 1.0
      %v676 = vmin.f32 %v674, 1.0
      %v679 = vcombine.low %v675, %v676
      %681 = vst [vmem:[%s280] sm:$0xff] %v679
      %s682 = smul.u32 2, %s18
      %p683 = scmp.lt.s32.totalorder %s682, 3
      %s684 = scalar_select %p683, %s682, 3
      %s685 = smul.addr %s684, 4
      %s686 = scalar_lea.vmem %s7, %s685
      // Predicated region
      $region49: #{pixelpred_forward.1} parent=47 // pred_check
        %p687 = pneg %p188
      $region50: #{pixelpred_forward.1} parent=47 // pred_check_branch
        %689 = sbr.rel (%p687) target = $region52
      $region51: #{pixelpred_forward.1} parent=47 // pred_region
        %s690 = smul.u32 2, %s18
      $region52: #{pixelpred_forward.1} parent=47 // pred_fallthru
        _
    $region48: #{pixelpred_forward.1} parent=5 // pred_fallthru
      _
    %p691 = scmp.le.s32.totalorder 2, %s13
    // Predicated region
    $region53: #{pixelpred_forward.1} parent=5 // pred_check
      %p692 = pneg %p691
    $region54: #{pixelpred_forward.1} parent=5 // pred_check_branch
      %694 = sbr.rel (%p692) target = $region56
    $region55: #{pixelpred_forward.1} parent=5 // pred_region
      %s695 = ssub.s32 %s13, 2
      // Predicated region
      $region57: #{pixelpred_forward.1} parent=55 // pred_check
        %p696 = pneg %p194
      $region58: #{pixelpred_forward.1} parent=55 // pred_check_branch
        %698 = sbr.rel (%p696) target = $region60
      $region59: #{pixelpred_forward.1} parent=55 // pred_region
        %s699 = smul.u32 2, %s19
        %p700 = scmp.lt.s32.totalorder %s699, 3
        %s701 = scalar_select %p700, %s699, 3
        %s702 = smul.addr %s701, 4
        %s703 = scalar_lea.vmem %s7, %s702
      $region60: #{pixelpred_forward.1} parent=55 // pred_fallthru
        _
    $region56: #{pixelpred_forward.1} parent=5 // pred_fallthru
      _
  $region6: #{pixelpred_forward.1} parent=0 // loop_footer
    %s17 = sadd.s32 1, %s13
  $region7: #{pixelpred_forward.1} parent=0 // loop_footer_branch
    %12 = sbr.rel target = $region3
  $region8: #{pixelpred_forward.1} parent=0 // loop_exit
    _

</llo_original>
